<compile_context>
chip_gen: v5e
topology: v5e:2x2
jax: 0.10.0
libtpu: 0.0.40
codegen_flags: <defaults>
</compile_context>

<pallas_src>
import functools
import math

import jax
import jax.numpy as jnp
from jax import lax
from jax.experimental import pallas as pl
from jax.experimental.pallas import tpu as pltpu

_LANES = 128
_SUBLANES = 8
_TARGET_BLOCK_BYTES = 2 * 1024 * 1024   # per input block; x2 inputs x2 buffers = 8 MiB


def _cdiv(a: int, b: int) -> int:
    return -(-a // b)


def _round_up(a: int, b: int) -> int:
    return _cdiv(a, b) * b


def _choose_block_rows(rows: int, itemsize: int, max_block_rows) -> int:
    """Largest multiple of 8 rows with block bytes <= target (dtype aware)."""
    target = _TARGET_BLOCK_BYTES // (_LANES * itemsize)
    target = max(_SUBLANES, (target // _SUBLANES) * _SUBLANES)
    if max_block_rows is not None:
        target = min(target, max(_SUBLANES, _round_up(int(max_block_rows), _SUBLANES)))
    return min(target, _round_up(rows, _SUBLANES))


def _choose_chunk_rows(block_rows: int) -> int:
    """Sub-chunk size for the in-block fori_loop (~8 chunks per block)."""
    if block_rows % 64 == 0:
        return block_rows // 8          # multiple of 8 and divides block_rows
    return _SUBLANES                    # 8 always divides a multiple of 8


def _dvr_partials_kernel(tj_ref, tm_ref, out_ref, sum_ref, m_ref, s_ref, *,
                         rows, block_rows, blocks_per_slice, chunk_rows):
    """Streaming sum + online logsumexp partials for one (slice, block) step."""
    c = pl.program_id(0)                 # slice (TensorCore) index
    i = pl.program_id(1)                 # block index within the slice

    @pl.when(i == 0)
    def _init():
        sum_ref[...] = jnp.zeros_like(sum_ref)
        m_ref[...] = jnp.full_like(m_ref, -jnp.inf)
        s_ref[...] = jnp.zeros_like(s_ref)

    gb = c * blocks_per_slice + i        # global block index
    valid = rows - gb * block_rows       # valid rows in this block (may be <= 0)

    nchunks = block_rows // chunk_rows
    csub = chunk_rows // _SUBLANES

    def accumulate(masked):
        def body(j, carry):
            r0 = pl.multiple_of(j * chunk_rows, chunk_rows)
            tj_c = tj_ref[pl.ds(r0, chunk_rows), :].astype(jnp.float32)
            tm_c = tm_ref[pl.ds(r0, chunk_rows), :].astype(jnp.float32)
            if masked:
                row_ids = r0 + lax.broadcasted_iota(
                    jnp.int32, (chunk_rows, _LANES), 0)
                keep = row_ids < valid
                tj_c = jnp.where(keep, tj_c, 0.0)
                tm_c = jnp.where(keep, tm_c, -jnp.inf)
            tj3 = tj_c.reshape(csub, _SUBLANES, _LANES)   # layout-free reshape
            tm3 = tm_c.reshape(csub, _SUBLANES, _LANES)

            # Per-(sublane, lane) running sum of T_joined.
            sum_ref[...] = sum_ref[...] + jnp.sum(tj3, axis=0)

            # Per-(sublane, lane) -inf-safe online logsumexp of T_marginal.
            m_old = m_ref[...]
            m_new = jnp.maximum(m_old, jnp.max(tm3, axis=0))
            m_safe = jnp.where(m_new > -jnp.inf, m_new, 0.0)
            s_ref[...] = (jnp.exp(m_old - m_safe) * s_ref[...]
                          + jnp.sum(jnp.exp(tm3 - m_safe), axis=0))
            m_ref[...] = m_new
            return carry

        lax.fori_loop(0, nchunks, body, 0, unroll=True)

    @pl.when(valid >= block_rows)        # hot path: full block, no mask cost
    def _full():
        accumulate(masked=False)

    @pl.when(valid < block_rows)         # last partial / out-of-range block
    def _partial():
        accumulate(masked=True)

    @pl.when(i == pl.num_programs(1) - 1)
    def _finalize():
        out_ref[0, 0, :, :] = sum_ref[...]
        out_ref[0, 1, :, :] = m_ref[...]
        out_ref[0, 2, :, :] = s_ref[...]


@functools.partial(jax.jit, static_argnames=("max_block_rows",))
def dvr_loss_pallas(T_joined, T_marginal, *, max_block_rows=None):
    """Returns (loss, logmeanexp(T_marginal), exp(logmeanexp)) as f32 scalars."""
    if T_joined.ndim != 1 or T_marginal.ndim != 1:
        raise ValueError("T_joined / T_marginal must be 1-D batch vectors")
    n_j, n_m = T_joined.shape[0], T_marginal.shape[0]
    if n_j == 0 or n_m == 0:
        raise ValueError("empty batch is not supported")

    tj, tm = T_joined, T_marginal
    if not jnp.issubdtype(tj.dtype, jnp.floating):
        tj = tj.astype(jnp.float32)
    if not jnp.issubdtype(tm.dtype, jnp.floating):
        tm = tm.astype(jnp.float32)

    rows = n_m // _LANES
    # The fused kernel streams both tensors on one grid; mismatched batch
    # sizes (legal in the PyTorch module, but unusual) or sub-128 batches fall
    # back to plain jnp (optimal at that size anyway).
    if n_j != n_m or rows == 0:
        lme = jax.scipy.special.logsumexp(tm.astype(jnp.float32)) - math.log(n_m)
        loss = -jnp.mean(tj.astype(jnp.float32)) + lme
        return loss, lme, jnp.exp(lme)

    n = n_m
    n_main = rows * _LANES
    tail = n - n_main

    itemsize = max(tj.dtype.itemsize, tm.dtype.itemsize)
    block_rows = _choose_block_rows(rows, itemsize, max_block_rows)
    chunk_rows = _choose_chunk_rows(block_rows)
    num_blocks = _cdiv(rows, block_rows)
    num_slices = 2 if num_blocks >= 2 else 1     # v7x: one slice per TensorCore
    blocks_per_slice = _cdiv(num_blocks, num_slices)

    if tail == 0:
        tj2 = tj.reshape(rows, _LANES)           # free metadata reshape (no pad)
        tm2 = tm.reshape(rows, _LANES)
    else:
        # Unaligned batch: kernel covers the 128-aligned prefix; the < 128
        # element tail is folded into the partials below with plain jnp.
        tj2 = tj[:n_main].reshape(rows, _LANES)
        tm2 = tm[:n_main].reshape(rows, _LANES)

    kernel = functools.partial(
        _dvr_partials_kernel, rows=rows, block_rows=block_rows,
        blocks_per_slice=blocks_per_slice, chunk_rows=chunk_rows)

    def in_map(c, i):
        # Clamp so a fully-out-of-range trailing block (odd block count on the
        # last slice) re-reads a valid block; its contribution is masked out.
        return (jnp.minimum(c * blocks_per_slice + i, num_blocks - 1), 0)

    partials = pl.pallas_call(
        kernel,
        out_shape=jax.ShapeDtypeStruct(
            (num_slices, 3, _SUBLANES, _LANES), jnp.float32),
        grid_spec=pltpu.PrefetchScalarGridSpec(
            num_scalar_prefetch=0,
            grid=(num_slices, blocks_per_slice),
            in_specs=[
                pl.BlockSpec((block_rows, _LANES), in_map),
                pl.BlockSpec((block_rows, _LANES), in_map),
            ],
            out_specs=pl.BlockSpec((1, 3, _SUBLANES, _LANES),
                                   lambda c, i: (c, 0, 0, 0)),
            scratch_shapes=[
                pltpu.VMEM((_SUBLANES, _LANES), jnp.float32),  # sum(T_joined)
                pltpu.VMEM((_SUBLANES, _LANES), jnp.float32),  # running max
                pltpu.VMEM((_SUBLANES, _LANES), jnp.float32),  # running sum-exp
            ],
        ),
        compiler_params=pltpu.CompilerParams(
            dimension_semantics=("parallel", "arbitrary"),
            vmem_limit_bytes=32 * 1024 * 1024,
        ),
    )(tj2, tm2)

    # ---- combine per-slice (8,128) partials (+ tail) with scalar jnp ----
    sum_tj = jnp.sum(partials[:, 0])
    # Per-position logsumexp; positions that never saw data give -inf + -inf.
    lse_pos = (partials[:, 1] + jnp.log(partials[:, 2])).reshape(-1)
    if tail > 0:
        sum_tj = sum_tj + jnp.sum(tj[n_main:].astype(jnp.float32))
        lse_pos = jnp.concatenate([lse_pos, tm[n_main:].astype(jnp.float32)])
    lme = jax.scipy.special.logsumexp(lse_pos) - math.log(n)
    loss = -(sum_tj / n) + lme
    return loss, lme, jnp.exp(lme)


class DVRLoss:
    """JAX/Pallas port of the PyTorch DVRLoss module (forward pass)."""

    def __init__(self, biased: bool = False, alpha: float = 0.01):
        if not isinstance(biased, bool):
            raise TypeError("Parameter `biased' has to be boolean")
        if not isinstance(alpha, float):
            raise TypeError("Parameter `alpha' has to be float")
        if not 0.0 <= alpha <= 1.0:
            raise ValueError("Parameter `alpha' has to be within the range [0; 1]")
        self.biased = biased
        self.alpha = alpha
        self.moving_average = None   # device-side f32 scalar once initialised
        # TODO(synk): DVRSecondTerm's unbiased custom backward (gradient scaled
        # by the EMA of exp(T)) would be a jax.custom_vjp around the same
        # kernel; only the forward value is implemented here.

    def __call__(self, T_joined, T_marginal):
        loss, _lme, exp_lme = dvr_loss_pallas(T_joined, T_marginal)
        if not self.biased:
            # EMA update stays on device: no .item()/host sync per step.
            if self.moving_average is None:
                self.moving_average = exp_lme
            else:
                self.moving_average = (self.alpha * exp_lme
                                       + (1.0 - self.alpha) * self.moving_average)
        return loss


def _reference(tj, tm):
    n = tm.shape[0]
    return (-jnp.mean(tj.astype(jnp.float32))
            + jax.scipy.special.logsumexp(tm.astype(jnp.float32))
            - math.log(n))


if __name__ == "__main__":
    key = jax.random.PRNGKey(0)
    k1, k2, k3, k4, k5, k6 = jax.random.split(key, 6)

    # 1) 128-aligned f32 batch: zero-copy reshape fast path, full-block path.
    n1 = 4096
    tj1 = jax.random.normal(k1, (n1,), dtype=jnp.float32)
    tm1 = jax.random.normal(k2, (n1,), dtype=jnp.float32) * 0.5 - 0.1
    loss1, lme1, exp1 = dvr_loss_pallas(tj1, tm1)
    loss1 = jax.block_until_ready(loss1)
    ref1 = _reference(tj1, tm1)
    assert jnp.allclose(loss1, ref1, atol=1e-5, rtol=1e-5), (loss1, ref1)
    assert jnp.allclose(exp1, jnp.exp(lme1), atol=1e-6, rtol=1e-6)

    # 2) Unaligned f32 batch through the module: <128-element tail fold,
    #    masked partial block, on-device EMA update.
    n2 = 3000
    tj2 = jax.random.normal(k3, (n2,), dtype=jnp.float32)
    tm2 = jax.random.normal(k4, (n2,), dtype=jnp.float32) * 0.3
    mod = DVRLoss(biased=False, alpha=0.01)
    loss2 = jax.block_until_ready(mod(tj2, tm2))
    ref2 = _reference(tj2, tm2)
    assert jnp.allclose(loss2, ref2, atol=1e-5, rtol=1e-5), (loss2, ref2)
    assert mod.moving_average is not None

    # 3) bf16 batch with a tiny forced block size: multi-block online-LSE
    #    carry, both "parallel" slices, a partial block and an out-of-range
    #    (fully masked) block on the second slice.
    n3 = 6000
    tj3 = jax.random.normal(k5, (n3,), dtype=jnp.bfloat16)
    tm3 = jax.random.normal(k6, (n3,), dtype=jnp.bfloat16) * 0.5
    loss3, _lme3, _exp3 = dvr_loss_pallas(tj3, tm3, max_block_rows=16)
    loss3 = jax.block_until_ready(loss3)
    ref3 = _reference(tj3, tm3)
    assert jnp.allclose(loss3, ref3, atol=1e-4, rtol=1e-4), (loss3, ref3)

    # 4) Degenerate batch: all T_marginal == -inf must give loss == -inf
    #    (not NaN), matching logsumexp semantics.
    n4 = 512
    tj4 = jax.random.normal(k1, (n4,), dtype=jnp.float32)
    tm4 = jnp.full((n4,), -jnp.inf, dtype=jnp.float32)
    loss4, _lme4, exp4 = dvr_loss_pallas(tj4, tm4)
    loss4 = jax.block_until_ready(loss4)
    assert jnp.isneginf(loss4), loss4
    assert float(exp4) == 0.0

    print("KERNEL_OK")
</pallas_src>

<mosaic_0001>
module attributes {stable_mosaic.version = 11 : i64} {
  func.func @_dvr_partials_kernel(%arg0: i32, %arg1: i32, %arg2: memref<32x128xf32, #tpu.memory_space<vmem>>, %arg3: memref<32x128xf32, #tpu.memory_space<vmem>>, %arg4: memref<1x3x8x128xf32, #tpu.memory_space<vmem>>, %arg5: memref<8x128xf32, #tpu.memory_space<vmem>>, %arg6: memref<8x128xf32, #tpu.memory_space<vmem>>, %arg7: memref<8x128xf32, #tpu.memory_space<vmem>>) attributes {dimension_semantics = [#tpu.dimension_semantics<parallel>, #tpu.dimension_semantics<arbitrary>], iteration_bounds = array<i64: 1, 1>, scalar_prefetch = 0 : i64, scratch_operands = 3 : i64, tpu.core_type = #tpu.core_type<tc>, window_params = [{transform_indices = @transform_0, window_bounds = array<i64: 32, 128>}, {transform_indices = @transform_1, window_bounds = array<i64: 32, 128>}, {transform_indices = @transform_2, window_bounds = array<i64: 1, 3, 8, 128>}]} {
    %c0_i32 = arith.constant 0 : i32
    %0 = arith.cmpi eq, %arg1, %c0_i32 : i32
    %1 = arith.extui %0 : i1 to i32
    %c0_i32_0 = arith.constant 0 : i32
    %2 = arith.cmpi ne, %1, %c0_i32_0 : i32
    scf.if %2 {
      %cst = arith.constant 0.000000e+00 : f32
      %16 = vector.broadcast %cst : f32 to vector<8x128xf32>
      %c0 = arith.constant 0 : index
      %c0_8 = arith.constant 0 : index
      %17 = vector.load %arg5[%c0, %c0_8] : memref<8x128xf32, #tpu.memory_space<vmem>>, vector<8x128xf32>
      tpu.vector_store %arg5[%c0, %c0_8], %16 {strides = array<i32>} : memref<8x128xf32, #tpu.memory_space<vmem>>, vector<8x128xf32>,
      %cst_9 = arith.constant 0xFF800000 : f32
      %18 = vector.broadcast %cst_9 : f32 to vector<8x128xf32>
      %c0_10 = arith.constant 0 : index
      %c0_11 = arith.constant 0 : index
      %19 = vector.load %arg6[%c0_10, %c0_11] : memref<8x128xf32, #tpu.memory_space<vmem>>, vector<8x128xf32>
      tpu.vector_store %arg6[%c0_10, %c0_11], %18 {strides = array<i32>} : memref<8x128xf32, #tpu.memory_space<vmem>>, vector<8x128xf32>,
      %cst_12 = arith.constant 0.000000e+00 : f32
      %20 = vector.broadcast %cst_12 : f32 to vector<8x128xf32>
      %c0_13 = arith.constant 0 : index
      %c0_14 = arith.constant 0 : index
      %21 = vector.load %arg7[%c0_13, %c0_14] : memref<8x128xf32, #tpu.memory_space<vmem>>, vector<8x128xf32>
      tpu.vector_store %arg7[%c0_13, %c0_14], %20 {strides = array<i32>} : memref<8x128xf32, #tpu.memory_space<vmem>>, vector<8x128xf32>,
    } else {
    }
    %c1_i32 = arith.constant 1 : i32
    %3 = arith.muli %arg0, %c1_i32 : i32
    %4 = arith.addi %3, %arg1 : i32
    %c32_i32 = arith.constant 32 : i32
    %5 = arith.muli %4, %c32_i32 : i32
    %c32_i32_1 = arith.constant 32 : i32
    %6 = arith.subi %c32_i32_1, %5 : i32
    %c32_i32_2 = arith.constant 32 : i32
    %7 = arith.cmpi sge, %6, %c32_i32_2 : i32
    %8 = arith.extui %7 : i1 to i32
    %c0_i32_3 = arith.constant 0 : i32
    %9 = arith.cmpi ne, %8, %c0_i32_3 : i32
    scf.if %9 {
      %c0_i32_8 = arith.constant 0 : i32
      %c8_i32 = arith.constant 8 : i32
      %16 = arith.muli %c0_i32_8, %c8_i32 : i32
      %17 = tpu.assume_multiple %16, 8 : i32
      %18 = arith.index_cast %17 : i32 to index
      %c0 = arith.constant 0 : index
      %19 = vector.load %arg2[%18, %c0] : memref<32x128xf32, #tpu.memory_space<vmem>>, vector<8x128xf32>
      %20 = arith.index_cast %17 : i32 to index
      %c0_9 = arith.constant 0 : index
      %21 = vector.load %arg3[%20, %c0_9] : memref<32x128xf32, #tpu.memory_space<vmem>>, vector<8x128xf32>
      %22 = vector.shape_cast %19 : vector<8x128xf32> to vector<1x8x128xf32>
      %23 = vector.shape_cast %21 : vector<8x128xf32> to vector<1x8x128xf32>
      %c0_10 = arith.constant 0 : index
      %c0_11 = arith.constant 0 : index
      %24 = vector.load %arg5[%c0_10, %c0_11] : memref<8x128xf32, #tpu.memory_space<vmem>>, vector<8x128xf32>
      %cst = arith.constant dense<0.000000e+00> : vector<8x128xf32>
      %25 = vector.multi_reduction <add>, %22, %cst [0] : vector<1x8x128xf32> to vector<8x128xf32>
      %26 = arith.addf %24, %25 : vector<8x128xf32>
      %c0_12 = arith.constant 0 : index
      %c0_13 = arith.constant 0 : index
      %27 = vector.load %arg5[%c0_12, %c0_13] : memref<8x128xf32, #tpu.memory_space<vmem>>, vector<8x128xf32>
      tpu.vector_store %arg5[%c0_12, %c0_13], %26 {strides = array<i32>} : memref<8x128xf32, #tpu.memory_space<vmem>>, vector<8x128xf32>,
      %c0_14 = arith.constant 0 : index
      %c0_15 = arith.constant 0 : index
      %28 = vector.load %arg6[%c0_14, %c0_15] : memref<8x128xf32, #tpu.memory_space<vmem>>, vector<8x128xf32>
      %cst_16 = arith.constant dense<0xFF800000> : vector<8x128xf32>
      %29 = vector.multi_reduction <maximumf>, %23, %cst_16 [0] : vector<1x8x128xf32> to vector<8x128xf32>
      %30 = arith.maximumf %28, %29 : vector<8x128xf32>
      %cst_17 = arith.constant 0xFF800000 : f32
      %31 = vector.broadcast %cst_17 : f32 to vector<8x128xf32>
      %32 = arith.cmpf ogt, %30, %31 : vector<8x128xf32>
      %cst_18 = arith.constant 0.000000e+00 : f32
      %33 = vector.broadcast %cst_18 : f32 to vector<8x128xf32>
      %34 = arith.select %32, %30, %33 : vector<8x128xi1>, vector<8x128xf32>
      %35 = arith.subf %28, %34 : vector<8x128xf32>
      %36 = math.exp %35 : vector<8x128xf32>
      %c0_19 = arith.constant 0 : index
      %c0_20 = arith.constant 0 : index
      %37 = vector.load %arg7[%c0_19, %c0_20] : memref<8x128xf32, #tpu.memory_space<vmem>>, vector<8x128xf32>
      %38 = arith.mulf %36, %37 : vector<8x128xf32>
      %39 = vector.shape_cast %34 : vector<8x128xf32> to vector<1x8x128xf32>
      %40 = arith.subf %23, %39 : vector<1x8x128xf32>
      %41 = math.exp %40 : vector<1x8x128xf32>
      %cst_21 = arith.constant dense<0.000000e+00> : vector<8x128xf32>
      %42 = vector.multi_reduction <add>, %41, %cst_21 [0] : vector<1x8x128xf32> to vector<8x128xf32>
      %43 = arith.addf %38, %42 : vector<8x128xf32>
      %c0_22 = arith.constant 0 : index
      %c0_23 = arith.constant 0 : index
      %44 = vector.load %arg7[%c0_22, %c0_23] : memref<8x128xf32, #tpu.memory_space<vmem>>, vector<8x128xf32>
      tpu.vector_store %arg7[%c0_22, %c0_23], %43 {strides = array<i32>} : memref<8x128xf32, #tpu.memory_space<vmem>>, vector<8x128xf32>,
      %c0_24 = arith.constant 0 : index
      %c0_25 = arith.constant 0 : index
      %45 = vector.load %arg6[%c0_24, %c0_25] : memref<8x128xf32, #tpu.memory_space<vmem>>, vector<8x128xf32>
      tpu.vector_store %arg6[%c0_24, %c0_25], %30 {strides = array<i32>} : memref<8x128xf32, #tpu.memory_space<vmem>>, vector<8x128xf32>,
      %c1_i32_26 = arith.constant 1 : i32
      %c8_i32_27 = arith.constant 8 : i32
      %46 = arith.muli %c1_i32_26, %c8_i32_27 : i32
      %47 = tpu.assume_multiple %46, 8 : i32
      %48 = arith.index_cast %47 : i32 to index
      %c0_28 = arith.constant 0 : index
      %49 = vector.load %arg2[%48, %c0_28] : memref<32x128xf32, #tpu.memory_space<vmem>>, vector<8x128xf32>
      %50 = arith.index_cast %47 : i32 to index
      %c0_29 = arith.constant 0 : index
      %51 = vector.load %arg3[%50, %c0_29] : memref<32x128xf32, #tpu.memory_space<vmem>>, vector<8x128xf32>
      %52 = vector.shape_cast %49 : vector<8x128xf32> to vector<1x8x128xf32>
      %53 = vector.shape_cast %51 : vector<8x128xf32> to vector<1x8x128xf32>
      %c0_30 = arith.constant 0 : index
      %c0_31 = arith.constant 0 : index
      %54 = vector.load %arg5[%c0_30, %c0_31] : memref<8x128xf32, #tpu.memory_space<vmem>>, vector<8x128xf32>
      %cst_32 = arith.constant dense<0.000000e+00> : vector<8x128xf32>
      %55 = vector.multi_reduction <add>, %52, %cst_32 [0] : vector<1x8x128xf32> to vector<8x128xf32>
      %56 = arith.addf %54, %55 : vector<8x128xf32>
      %c0_33 = arith.constant 0 : index
      %c0_34 = arith.constant 0 : index
      %57 = vector.load %arg5[%c0_33, %c0_34] : memref<8x128xf32, #tpu.memory_space<vmem>>, vector<8x128xf32>
      tpu.vector_store %arg5[%c0_33, %c0_34], %56 {strides = array<i32>} : memref<8x128xf32, #tpu.memory_space<vmem>>, vector<8x128xf32>,
      %c0_35 = arith.constant 0 : index
      %c0_36 = arith.constant 0 : index
      %58 = vector.load %arg6[%c0_35, %c0_36] : memref<8x128xf32, #tpu.memory_space<vmem>>, vector<8x128xf32>
      %cst_37 = arith.constant dense<0xFF800000> : vector<8x128xf32>
      %59 = vector.multi_reduction <maximumf>, %53, %cst_37 [0] : vector<1x8x128xf32> to vector<8x128xf32>
      %60 = arith.maximumf %58, %59 : vector<8x128xf32>
      %cst_38 = arith.constant 0xFF800000 : f32
      %61 = vector.broadcast %cst_38 : f32 to vector<8x128xf32>
      %62 = arith.cmpf ogt, %60, %61 : vector<8x128xf32>
      %cst_39 = arith.constant 0.000000e+00 : f32
      %63 = vector.broadcast %cst_39 : f32 to vector<8x128xf32>
      %64 = arith.select %62, %60, %63 : vector<8x128xi1>, vector<8x128xf32>
      %65 = arith.subf %58, %64 : vector<8x128xf32>
      %66 = math.exp %65 : vector<8x128xf32>
      %c0_40 = arith.constant 0 : index
      %c0_41 = arith.constant 0 : index
      %67 = vector.load %arg7[%c0_40, %c0_41] : memref<8x128xf32, #tpu.memory_space<vmem>>, vector<8x128xf32>
      %68 = arith.mulf %66, %67 : vector<8x128xf32>
      %69 = vector.shape_cast %64 : vector<8x128xf32> to vector<1x8x128xf32>
      %70 = arith.subf %53, %69 : vector<1x8x128xf32>
      %71 = math.exp %70 : vector<1x8x128xf32>
      %cst_42 = arith.constant dense<0.000000e+00> : vector<8x128xf32>
      %72 = vector.multi_reduction <add>, %71, %cst_42 [0] : vector<1x8x128xf32> to vector<8x128xf32>
      %73 = arith.addf %68, %72 : vector<8x128xf32>
      %c0_43 = arith.constant 0 : index
      %c0_44 = arith.constant 0 : index
      %74 = vector.load %arg7[%c0_43, %c0_44] : memref<8x128xf32, #tpu.memory_space<vmem>>, vector<8x128xf32>
      tpu.vector_store %arg7[%c0_43, %c0_44], %73 {strides = array<i32>} : memref<8x128xf32, #tpu.memory_space<vmem>>, vector<8x128xf32>,
      %c0_45 = arith.constant 0 : index
      %c0_46 = arith.constant 0 : index
      %75 = vector.load %arg6[%c0_45, %c0_46] : memref<8x128xf32, #tpu.memory_space<vmem>>, vector<8x128xf32>
      tpu.vector_store %arg6[%c0_45, %c0_46], %60 {strides = array<i32>} : memref<8x128xf32, #tpu.memory_space<vmem>>, vector<8x128xf32>,
      %c2_i32 = arith.constant 2 : i32
      %c8_i32_47 = arith.constant 8 : i32
      %76 = arith.muli %c2_i32, %c8_i32_47 : i32
      %77 = tpu.assume_multiple %76, 8 : i32
      %78 = arith.index_cast %77 : i32 to index
      %c0_48 = arith.constant 0 : index
      %79 = vector.load %arg2[%78, %c0_48] : memref<32x128xf32, #tpu.memory_space<vmem>>, vector<8x128xf32>
      %80 = arith.index_cast %77 : i32 to index
      %c0_49 = arith.constant 0 : index
      %81 = vector.load %arg3[%80, %c0_49] : memref<32x128xf32, #tpu.memory_space<vmem>>, vector<8x128xf32>
      %82 = vector.shape_cast %79 : vector<8x128xf32> to vector<1x8x128xf32>
      %83 = vector.shape_cast %81 : vector<8x128xf32> to vector<1x8x128xf32>
      %c0_50 = arith.constant 0 : index
      %c0_51 = arith.constant 0 : index
      %84 = vector.load %arg5[%c0_50, %c0_51] : memref<8x128xf32, #tpu.memory_space<vmem>>, vector<8x128xf32>
      %cst_52 = arith.constant dense<0.000000e+00> : vector<8x128xf32>
      %85 = vector.multi_reduction <add>, %82, %cst_52 [0] : vector<1x8x128xf32> to vector<8x128xf32>
      %86 = arith.addf %84, %85 : vector<8x128xf32>
      %c0_53 = arith.constant 0 : index
      %c0_54 = arith.constant 0 : index
      %87 = vector.load %arg5[%c0_53, %c0_54] : memref<8x128xf32, #tpu.memory_space<vmem>>, vector<8x128xf32>
      tpu.vector_store %arg5[%c0_53, %c0_54], %86 {strides = array<i32>} : memref<8x128xf32, #tpu.memory_space<vmem>>, vector<8x128xf32>,
      %c0_55 = arith.constant 0 : index
      %c0_56 = arith.constant 0 : index
      %88 = vector.load %arg6[%c0_55, %c0_56] : memref<8x128xf32, #tpu.memory_space<vmem>>, vector<8x128xf32>
      %cst_57 = arith.constant dense<0xFF800000> : vector<8x128xf32>
      %89 = vector.multi_reduction <maximumf>, %83, %cst_57 [0] : vector<1x8x128xf32> to vector<8x128xf32>
      %90 = arith.maximumf %88, %89 : vector<8x128xf32>
      %cst_58 = arith.constant 0xFF800000 : f32
      %91 = vector.broadcast %cst_58 : f32 to vector<8x128xf32>
      %92 = arith.cmpf ogt, %90, %91 : vector<8x128xf32>
      %cst_59 = arith.constant 0.000000e+00 : f32
      %93 = vector.broadcast %cst_59 : f32 to vector<8x128xf32>
      %94 = arith.select %92, %90, %93 : vector<8x128xi1>, vector<8x128xf32>
      %95 = arith.subf %88, %94 : vector<8x128xf32>
      %96 = math.exp %95 : vector<8x128xf32>
      %c0_60 = arith.constant 0 : index
      %c0_61 = arith.constant 0 : index
      %97 = vector.load %arg7[%c0_60, %c0_61] : memref<8x128xf32, #tpu.memory_space<vmem>>, vector<8x128xf32>
      %98 = arith.mulf %96, %97 : vector<8x128xf32>
      %99 = vector.shape_cast %94 : vector<8x128xf32> to vector<1x8x128xf32>
      %100 = arith.subf %83, %99 : vector<1x8x128xf32>
      %101 = math.exp %100 : vector<1x8x128xf32>
      %cst_62 = arith.constant dense<0.000000e+00> : vector<8x128xf32>
      %102 = vector.multi_reduction <add>, %101, %cst_62 [0] : vector<1x8x128xf32> to vector<8x128xf32>
      %103 = arith.addf %98, %102 : vector<8x128xf32>
      %c0_63 = arith.constant 0 : index
      %c0_64 = arith.constant 0 : index
      %104 = vector.load %arg7[%c0_63, %c0_64] : memref<8x128xf32, #tpu.memory_space<vmem>>, vector<8x128xf32>
      tpu.vector_store %arg7[%c0_63, %c0_64], %103 {strides = array<i32>} : memref<8x128xf32, #tpu.memory_space<vmem>>, vector<8x128xf32>,
      %c0_65 = arith.constant 0 : index
      %c0_66 = arith.constant 0 : index
      %105 = vector.load %arg6[%c0_65, %c0_66] : memref<8x128xf32, #tpu.memory_space<vmem>>, vector<8x128xf32>
      tpu.vector_store %arg6[%c0_65, %c0_66], %90 {strides = array<i32>} : memref<8x128xf32, #tpu.memory_space<vmem>>, vector<8x128xf32>,
      %c3_i32 = arith.constant 3 : i32
      %c8_i32_67 = arith.constant 8 : i32
      %106 = arith.muli %c3_i32, %c8_i32_67 : i32
      %107 = tpu.assume_multiple %106, 8 : i32
      %108 = arith.index_cast %107 : i32 to index
      %c0_68 = arith.constant 0 : index
      %109 = vector.load %arg2[%108, %c0_68] : memref<32x128xf32, #tpu.memory_space<vmem>>, vector<8x128xf32>
      %110 = arith.index_cast %107 : i32 to index
      %c0_69 = arith.constant 0 : index
      %111 = vector.load %arg3[%110, %c0_69] : memref<32x128xf32, #tpu.memory_space<vmem>>, vector<8x128xf32>
      %112 = vector.shape_cast %109 : vector<8x128xf32> to vector<1x8x128xf32>
      %113 = vector.shape_cast %111 : vector<8x128xf32> to vector<1x8x128xf32>
      %c0_70 = arith.constant 0 : index
      %c0_71 = arith.constant 0 : index
      %114 = vector.load %arg5[%c0_70, %c0_71] : memref<8x128xf32, #tpu.memory_space<vmem>>, vector<8x128xf32>
      %cst_72 = arith.constant dense<0.000000e+00> : vector<8x128xf32>
      %115 = vector.multi_reduction <add>, %112, %cst_72 [0] : vector<1x8x128xf32> to vector<8x128xf32>
      %116 = arith.addf %114, %115 : vector<8x128xf32>
      %c0_73 = arith.constant 0 : index
      %c0_74 = arith.constant 0 : index
      %117 = vector.load %arg5[%c0_73, %c0_74] : memref<8x128xf32, #tpu.memory_space<vmem>>, vector<8x128xf32>
      tpu.vector_store %arg5[%c0_73, %c0_74], %116 {strides = array<i32>} : memref<8x128xf32, #tpu.memory_space<vmem>>, vector<8x128xf32>,
      %c0_75 = arith.constant 0 : index
      %c0_76 = arith.constant 0 : index
      %118 = vector.load %arg6[%c0_75, %c0_76] : memref<8x128xf32, #tpu.memory_space<vmem>>, vector<8x128xf32>
      %cst_77 = arith.constant dense<0xFF800000> : vector<8x128xf32>
      %119 = vector.multi_reduction <maximumf>, %113, %cst_77 [0] : vector<1x8x128xf32> to vector<8x128xf32>
      %120 = arith.maximumf %118, %119 : vector<8x128xf32>
      %cst_78 = arith.constant 0xFF800000 : f32
      %121 = vector.broadcast %cst_78 : f32 to vector<8x128xf32>
      %122 = arith.cmpf ogt, %120, %121 : vector<8x128xf32>
      %cst_79 = arith.constant 0.000000e+00 : f32
      %123 = vector.broadcast %cst_79 : f32 to vector<8x128xf32>
      %124 = arith.select %122, %120, %123 : vector<8x128xi1>, vector<8x128xf32>
      %125 = arith.subf %118, %124 : vector<8x128xf32>
      %126 = math.exp %125 : vector<8x128xf32>
      %c0_80 = arith.constant 0 : index
      %c0_81 = arith.constant 0 : index
      %127 = vector.load %arg7[%c0_80, %c0_81] : memref<8x128xf32, #tpu.memory_space<vmem>>, vector<8x128xf32>
      %128 = arith.mulf %126, %127 : vector<8x128xf32>
      %129 = vector.shape_cast %124 : vector<8x128xf32> to vector<1x8x128xf32>
      %130 = arith.subf %113, %129 : vector<1x8x128xf32>
      %131 = math.exp %130 : vector<1x8x128xf32>
      %cst_82 = arith.constant dense<0.000000e+00> : vector<8x128xf32>
      %132 = vector.multi_reduction <add>, %131, %cst_82 [0] : vector<1x8x128xf32> to vector<8x128xf32>
      %133 = arith.addf %128, %132 : vector<8x128xf32>
      %c0_83 = arith.constant 0 : index
      %c0_84 = arith.constant 0 : index
      %134 = vector.load %arg7[%c0_83, %c0_84] : memref<8x128xf32, #tpu.memory_space<vmem>>, vector<8x128xf32>
      tpu.vector_store %arg7[%c0_83, %c0_84], %133 {strides = array<i32>} : memref<8x128xf32, #tpu.memory_space<vmem>>, vector<8x128xf32>,
      %c0_85 = arith.constant 0 : index
      %c0_86 = arith.constant 0 : index
      %135 = vector.load %arg6[%c0_85, %c0_86] : memref<8x128xf32, #tpu.memory_space<vmem>>, vector<8x128xf32>
      tpu.vector_store %arg6[%c0_85, %c0_86], %120 {strides = array<i32>} : memref<8x128xf32, #tpu.memory_space<vmem>>, vector<8x128xf32>,
      %c4_i32 = arith.constant 4 : i32
    } else {
    }
    %c32_i32_4 = arith.constant 32 : i32
    %10 = arith.cmpi slt, %6, %c32_i32_4 : i32
    %11 = arith.extui %10 : i1 to i32
    %c0_i32_5 = arith.constant 0 : i32
    %12 = arith.cmpi ne, %11, %c0_i32_5 : i32
    scf.if %12 {
      %c0_i32_8 = arith.constant 0 : i32
      %c8_i32 = arith.constant 8 : i32
      %16 = arith.muli %c0_i32_8, %c8_i32 : i32
      %17 = tpu.assume_multiple %16, 8 : i32
      %18 = arith.index_cast %17 : i32 to index
      %c0 = arith.constant 0 : index
      %19 = vector.load %arg2[%18, %c0] : memref<32x128xf32, #tpu.memory_space<vmem>>, vector<8x128xf32>
      %20 = arith.index_cast %17 : i32 to index
      %c0_9 = arith.constant 0 : index
      %21 = vector.load %arg3[%20, %c0_9] : memref<32x128xf32, #tpu.memory_space<vmem>>, vector<8x128xf32>
      %22 = tpu.iota {dimensions = array<i32: 0>} : vector<8x128xi32>
      %23 = vector.broadcast %17 : i32 to vector<8x128xi32>
      %24 = arith.addi %23, %22 : vector<8x128xi32>
      %25 = vector.broadcast %6 : i32 to vector<8x128xi32>
      %26 = arith.cmpi slt, %24, %25 : vector<8x128xi32>
      %cst = arith.constant 0.000000e+00 : f32
      %27 = vector.broadcast %cst : f32 to vector<8x128xf32>
      %28 = arith.select %26, %19, %27 : vector<8x128xi1>, vector<8x128xf32>
      %cst_10 = arith.constant 0xFF800000 : f32
      %29 = vector.broadcast %cst_10 : f32 to vector<8x128xf32>
      %30 = arith.select %26, %21, %29 : vector<8x128xi1>, vector<8x128xf32>
      %31 = vector.shape_cast %28 : vector<8x128xf32> to vector<1x8x128xf32>
      %32 = vector.shape_cast %30 : vector<8x128xf32> to vector<1x8x128xf32>
      %c0_11 = arith.constant 0 : index
      %c0_12 = arith.constant 0 : index
      %33 = vector.load %arg5[%c0_11, %c0_12] : memref<8x128xf32, #tpu.memory_space<vmem>>, vector<8x128xf32>
      %cst_13 = arith.constant dense<0.000000e+00> : vector<8x128xf32>
      %34 = vector.multi_reduction <add>, %31, %cst_13 [0] : vector<1x8x128xf32> to vector<8x128xf32>
      %35 = arith.addf %33, %34 : vector<8x128xf32>
      %c0_14 = arith.constant 0 : index
      %c0_15 = arith.constant 0 : index
      %36 = vector.load %arg5[%c0_14, %c0_15] : memref<8x128xf32, #tpu.memory_space<vmem>>, vector<8x128xf32>
      tpu.vector_store %arg5[%c0_14, %c0_15], %35 {strides = array<i32>} : memref<8x128xf32, #tpu.memory_space<vmem>>, vector<8x128xf32>,
      %c0_16 = arith.constant 0 : index
      %c0_17 = arith.constant 0 : index
      %37 = vector.load %arg6[%c0_16, %c0_17] : memref<8x128xf32, #tpu.memory_space<vmem>>, vector<8x128xf32>
      %cst_18 = arith.constant dense<0xFF800000> : vector<8x128xf32>
      %38 = vector.multi_reduction <maximumf>, %32, %cst_18 [0] : vector<1x8x128xf32> to vector<8x128xf32>
      %39 = arith.maximumf %37, %38 : vector<8x128xf32>
      %cst_19 = arith.constant 0xFF800000 : f32
      %40 = vector.broadcast %cst_19 : f32 to vector<8x128xf32>
      %41 = arith.cmpf ogt, %39, %40 : vector<8x128xf32>
      %cst_20 = arith.constant 0.000000e+00 : f32
      %42 = vector.broadcast %cst_20 : f32 to vector<8x128xf32>
      %43 = arith.select %41, %39, %42 : vector<8x128xi1>, vector<8x128xf32>
      %44 = arith.subf %37, %43 : vector<8x128xf32>
      %45 = math.exp %44 : vector<8x128xf32>
      %c0_21 = arith.constant 0 : index
      %c0_22 = arith.constant 0 : index
      %46 = vector.load %arg7[%c0_21, %c0_22] : memref<8x128xf32, #tpu.memory_space<vmem>>, vector<8x128xf32>
      %47 = arith.mulf %45, %46 : vector<8x128xf32>
      %48 = vector.shape_cast %43 : vector<8x128xf32> to vector<1x8x128xf32>
      %49 = arith.subf %32, %48 : vector<1x8x128xf32>
      %50 = math.exp %49 : vector<1x8x128xf32>
      %cst_23 = arith.constant dense<0.000000e+00> : vector<8x128xf32>
      %51 = vector.multi_reduction <add>, %50, %cst_23 [0] : vector<1x8x128xf32> to vector<8x128xf32>
      %52 = arith.addf %47, %51 : vector<8x128xf32>
      %c0_24 = arith.constant 0 : index
      %c0_25 = arith.constant 0 : index
      %53 = vector.load %arg7[%c0_24, %c0_25] : memref<8x128xf32, #tpu.memory_space<vmem>>, vector<8x128xf32>
      tpu.vector_store %arg7[%c0_24, %c0_25], %52 {strides = array<i32>} : memref<8x128xf32, #tpu.memory_space<vmem>>, vector<8x128xf32>,
      %c0_26 = arith.constant 0 : index
      %c0_27 = arith.constant 0 : index
      %54 = vector.load %arg6[%c0_26, %c0_27] : memref<8x128xf32, #tpu.memory_space<vmem>>, vector<8x128xf32>
      tpu.vector_store %arg6[%c0_26, %c0_27], %39 {strides = array<i32>} : memref<8x128xf32, #tpu.memory_space<vmem>>, vector<8x128xf32>,
      %c1_i32_28 = arith.constant 1 : i32
      %c8_i32_29 = arith.constant 8 : i32
      %55 = arith.muli %c1_i32_28, %c8_i32_29 : i32
      %56 = tpu.assume_multiple %55, 8 : i32
      %57 = arith.index_cast %56 : i32 to index
      %c0_30 = arith.constant 0 : index
      %58 = vector.load %arg2[%57, %c0_30] : memref<32x128xf32, #tpu.memory_space<vmem>>, vector<8x128xf32>
      %59 = arith.index_cast %56 : i32 to index
      %c0_31 = arith.constant 0 : index
      %60 = vector.load %arg3[%59, %c0_31] : memref<32x128xf32, #tpu.memory_space<vmem>>, vector<8x128xf32>
      %61 = tpu.iota {dimensions = array<i32: 0>} : vector<8x128xi32>
      %62 = vector.broadcast %56 : i32 to vector<8x128xi32>
      %63 = arith.addi %62, %61 : vector<8x128xi32>
      %64 = vector.broadcast %6 : i32 to vector<8x128xi32>
      %65 = arith.cmpi slt, %63, %64 : vector<8x128xi32>
      %cst_32 = arith.constant 0.000000e+00 : f32
      %66 = vector.broadcast %cst_32 : f32 to vector<8x128xf32>
      %67 = arith.select %65, %58, %66 : vector<8x128xi1>, vector<8x128xf32>
      %cst_33 = arith.constant 0xFF800000 : f32
      %68 = vector.broadcast %cst_33 : f32 to vector<8x128xf32>
      %69 = arith.select %65, %60, %68 : vector<8x128xi1>, vector<8x128xf32>
      %70 = vector.shape_cast %67 : vector<8x128xf32> to vector<1x8x128xf32>
      %71 = vector.shape_cast %69 : vector<8x128xf32> to vector<1x8x128xf32>
      %c0_34 = arith.constant 0 : index
      %c0_35 = arith.constant 0 : index
      %72 = vector.load %arg5[%c0_34, %c0_35] : memref<8x128xf32, #tpu.memory_space<vmem>>, vector<8x128xf32>
      %cst_36 = arith.constant dense<0.000000e+00> : vector<8x128xf32>
      %73 = vector.multi_reduction <add>, %70, %cst_36 [0] : vector<1x8x128xf32> to vector<8x128xf32>
      %74 = arith.addf %72, %73 : vector<8x128xf32>
      %c0_37 = arith.constant 0 : index
      %c0_38 = arith.constant 0 : index
      %75 = vector.load %arg5[%c0_37, %c0_38] : memref<8x128xf32, #tpu.memory_space<vmem>>, vector<8x128xf32>
      tpu.vector_store %arg5[%c0_37, %c0_38], %74 {strides = array<i32>} : memref<8x128xf32, #tpu.memory_space<vmem>>, vector<8x128xf32>,
      %c0_39 = arith.constant 0 : index
      %c0_40 = arith.constant 0 : index
      %76 = vector.load %arg6[%c0_39, %c0_40] : memref<8x128xf32, #tpu.memory_space<vmem>>, vector<8x128xf32>
      %cst_41 = arith.constant dense<0xFF800000> : vector<8x128xf32>
      %77 = vector.multi_reduction <maximumf>, %71, %cst_41 [0] : vector<1x8x128xf32> to vector<8x128xf32>
      %78 = arith.maximumf %76, %77 : vector<8x128xf32>
      %cst_42 = arith.constant 0xFF800000 : f32
      %79 = vector.broadcast %cst_42 : f32 to vector<8x128xf32>
      %80 = arith.cmpf ogt, %78, %79 : vector<8x128xf32>
      %cst_43 = arith.constant 0.000000e+00 : f32
      %81 = vector.broadcast %cst_43 : f32 to vector<8x128xf32>
      %82 = arith.select %80, %78, %81 : vector<8x128xi1>, vector<8x128xf32>
      %83 = arith.subf %76, %82 : vector<8x128xf32>
      %84 = math.exp %83 : vector<8x128xf32>
      %c0_44 = arith.constant 0 : index
      %c0_45 = arith.constant 0 : index
      %85 = vector.load %arg7[%c0_44, %c0_45] : memref<8x128xf32, #tpu.memory_space<vmem>>, vector<8x128xf32>
      %86 = arith.mulf %84, %85 : vector<8x128xf32>
      %87 = vector.shape_cast %82 : vector<8x128xf32> to vector<1x8x128xf32>
      %88 = arith.subf %71, %87 : vector<1x8x128xf32>
      %89 = math.exp %88 : vector<1x8x128xf32>
      %cst_46 = arith.constant dense<0.000000e+00> : vector<8x128xf32>
      %90 = vector.multi_reduction <add>, %89, %cst_46 [0] : vector<1x8x128xf32> to vector<8x128xf32>
      %91 = arith.addf %86, %90 : vector<8x128xf32>
      %c0_47 = arith.constant 0 : index
      %c0_48 = arith.constant 0 : index
      %92 = vector.load %arg7[%c0_47, %c0_48] : memref<8x128xf32, #tpu.memory_space<vmem>>, vector<8x128xf32>
      tpu.vector_store %arg7[%c0_47, %c0_48], %91 {strides = array<i32>} : memref<8x128xf32, #tpu.memory_space<vmem>>, vector<8x128xf32>,
      %c0_49 = arith.constant 0 : index
      %c0_50 = arith.constant 0 : index
      %93 = vector.load %arg6[%c0_49, %c0_50] : memref<8x128xf32, #tpu.memory_space<vmem>>, vector<8x128xf32>
      tpu.vector_store %arg6[%c0_49, %c0_50], %78 {strides = array<i32>} : memref<8x128xf32, #tpu.memory_space<vmem>>, vector<8x128xf32>,
      %c2_i32 = arith.constant 2 : i32
      %c8_i32_51 = arith.constant 8 : i32
      %94 = arith.muli %c2_i32, %c8_i32_51 : i32
      %95 = tpu.assume_multiple %94, 8 : i32
      %96 = arith.index_cast %95 : i32 to index
      %c0_52 = arith.constant 0 : index
      %97 = vector.load %arg2[%96, %c0_52] : memref<32x128xf32, #tpu.memory_space<vmem>>, vector<8x128xf32>
      %98 = arith.index_cast %95 : i32 to index
      %c0_53 = arith.constant 0 : index
      %99 = vector.load %arg3[%98, %c0_53] : memref<32x128xf32, #tpu.memory_space<vmem>>, vector<8x128xf32>
      %100 = tpu.iota {dimensions = array<i32: 0>} : vector<8x128xi32>
      %101 = vector.broadcast %95 : i32 to vector<8x128xi32>
      %102 = arith.addi %101, %100 : vector<8x128xi32>
      %103 = vector.broadcast %6 : i32 to vector<8x128xi32>
      %104 = arith.cmpi slt, %102, %103 : vector<8x128xi32>
      %cst_54 = arith.constant 0.000000e+00 : f32
      %105 = vector.broadcast %cst_54 : f32 to vector<8x128xf32>
      %106 = arith.select %104, %97, %105 : vector<8x128xi1>, vector<8x128xf32>
      %cst_55 = arith.constant 0xFF800000 : f32
      %107 = vector.broadcast %cst_55 : f32 to vector<8x128xf32>
      %108 = arith.select %104, %99, %107 : vector<8x128xi1>, vector<8x128xf32>
      %109 = vector.shape_cast %106 : vector<8x128xf32> to vector<1x8x128xf32>
      %110 = vector.shape_cast %108 : vector<8x128xf32> to vector<1x8x128xf32>
      %c0_56 = arith.constant 0 : index
      %c0_57 = arith.constant 0 : index
      %111 = vector.load %arg5[%c0_56, %c0_57] : memref<8x128xf32, #tpu.memory_space<vmem>>, vector<8x128xf32>
      %cst_58 = arith.constant dense<0.000000e+00> : vector<8x128xf32>
      %112 = vector.multi_reduction <add>, %109, %cst_58 [0] : vector<1x8x128xf32> to vector<8x128xf32>
      %113 = arith.addf %111, %112 : vector<8x128xf32>
      %c0_59 = arith.constant 0 : index
      %c0_60 = arith.constant 0 : index
      %114 = vector.load %arg5[%c0_59, %c0_60] : memref<8x128xf32, #tpu.memory_space<vmem>>, vector<8x128xf32>
      tpu.vector_store %arg5[%c0_59, %c0_60], %113 {strides = array<i32>} : memref<8x128xf32, #tpu.memory_space<vmem>>, vector<8x128xf32>,
      %c0_61 = arith.constant 0 : index
      %c0_62 = arith.constant 0 : index
      %115 = vector.load %arg6[%c0_61, %c0_62] : memref<8x128xf32, #tpu.memory_space<vmem>>, vector<8x128xf32>
      %cst_63 = arith.constant dense<0xFF800000> : vector<8x128xf32>
      %116 = vector.multi_reduction <maximumf>, %110, %cst_63 [0] : vector<1x8x128xf32> to vector<8x128xf32>
      %117 = arith.maximumf %115, %116 : vector<8x128xf32>
      %cst_64 = arith.constant 0xFF800000 : f32
      %118 = vector.broadcast %cst_64 : f32 to vector<8x128xf32>
      %119 = arith.cmpf ogt, %117, %118 : vector<8x128xf32>
      %cst_65 = arith.constant 0.000000e+00 : f32
      %120 = vector.broadcast %cst_65 : f32 to vector<8x128xf32>
      %121 = arith.select %119, %117, %120 : vector<8x128xi1>, vector<8x128xf32>
      %122 = arith.subf %115, %121 : vector<8x128xf32>
      %123 = math.exp %122 : vector<8x128xf32>
      %c0_66 = arith.constant 0 : index
      %c0_67 = arith.constant 0 : index
      %124 = vector.load %arg7[%c0_66, %c0_67] : memref<8x128xf32, #tpu.memory_space<vmem>>, vector<8x128xf32>
      %125 = arith.mulf %123, %124 : vector<8x128xf32>
      %126 = vector.shape_cast %121 : vector<8x128xf32> to vector<1x8x128xf32>
      %127 = arith.subf %110, %126 : vector<1x8x128xf32>
      %128 = math.exp %127 : vector<1x8x128xf32>
      %cst_68 = arith.constant dense<0.000000e+00> : vector<8x128xf32>
      %129 = vector.multi_reduction <add>, %128, %cst_68 [0] : vector<1x8x128xf32> to vector<8x128xf32>
      %130 = arith.addf %125, %129 : vector<8x128xf32>
      %c0_69 = arith.constant 0 : index
      %c0_70 = arith.constant 0 : index
      %131 = vector.load %arg7[%c0_69, %c0_70] : memref<8x128xf32, #tpu.memory_space<vmem>>, vector<8x128xf32>
      tpu.vector_store %arg7[%c0_69, %c0_70], %130 {strides = array<i32>} : memref<8x128xf32, #tpu.memory_space<vmem>>, vector<8x128xf32>,
      %c0_71 = arith.constant 0 : index
      %c0_72 = arith.constant 0 : index
      %132 = vector.load %arg6[%c0_71, %c0_72] : memref<8x128xf32, #tpu.memory_space<vmem>>, vector<8x128xf32>
      tpu.vector_store %arg6[%c0_71, %c0_72], %117 {strides = array<i32>} : memref<8x128xf32, #tpu.memory_space<vmem>>, vector<8x128xf32>,
      %c3_i32 = arith.constant 3 : i32
      %c8_i32_73 = arith.constant 8 : i32
      %133 = arith.muli %c3_i32, %c8_i32_73 : i32
      %134 = tpu.assume_multiple %133, 8 : i32
      %135 = arith.index_cast %134 : i32 to index
      %c0_74 = arith.constant 0 : index
      %136 = vector.load %arg2[%135, %c0_74] : memref<32x128xf32, #tpu.memory_space<vmem>>, vector<8x128xf32>
      %137 = arith.index_cast %134 : i32 to index
      %c0_75 = arith.constant 0 : index
      %138 = vector.load %arg3[%137, %c0_75] : memref<32x128xf32, #tpu.memory_space<vmem>>, vector<8x128xf32>
      %139 = tpu.iota {dimensions = array<i32: 0>} : vector<8x128xi32>
      %140 = vector.broadcast %134 : i32 to vector<8x128xi32>
      %141 = arith.addi %140, %139 : vector<8x128xi32>
      %142 = vector.broadcast %6 : i32 to vector<8x128xi32>
      %143 = arith.cmpi slt, %141, %142 : vector<8x128xi32>
      %cst_76 = arith.constant 0.000000e+00 : f32
      %144 = vector.broadcast %cst_76 : f32 to vector<8x128xf32>
      %145 = arith.select %143, %136, %144 : vector<8x128xi1>, vector<8x128xf32>
      %cst_77 = arith.constant 0xFF800000 : f32
      %146 = vector.broadcast %cst_77 : f32 to vector<8x128xf32>
      %147 = arith.select %143, %138, %146 : vector<8x128xi1>, vector<8x128xf32>
      %148 = vector.shape_cast %145 : vector<8x128xf32> to vector<1x8x128xf32>
      %149 = vector.shape_cast %147 : vector<8x128xf32> to vector<1x8x128xf32>
      %c0_78 = arith.constant 0 : index
      %c0_79 = arith.constant 0 : index
      %150 = vector.load %arg5[%c0_78, %c0_79] : memref<8x128xf32, #tpu.memory_space<vmem>>, vector<8x128xf32>
      %cst_80 = arith.constant dense<0.000000e+00> : vector<8x128xf32>
      %151 = vector.multi_reduction <add>, %148, %cst_80 [0] : vector<1x8x128xf32> to vector<8x128xf32>
      %152 = arith.addf %150, %151 : vector<8x128xf32>
      %c0_81 = arith.constant 0 : index
      %c0_82 = arith.constant 0 : index
      %153 = vector.load %arg5[%c0_81, %c0_82] : memref<8x128xf32, #tpu.memory_space<vmem>>, vector<8x128xf32>
      tpu.vector_store %arg5[%c0_81, %c0_82], %152 {strides = array<i32>} : memref<8x128xf32, #tpu.memory_space<vmem>>, vector<8x128xf32>,
      %c0_83 = arith.constant 0 : index
      %c0_84 = arith.constant 0 : index
      %154 = vector.load %arg6[%c0_83, %c0_84] : memref<8x128xf32, #tpu.memory_space<vmem>>, vector<8x128xf32>
      %cst_85 = arith.constant dense<0xFF800000> : vector<8x128xf32>
      %155 = vector.multi_reduction <maximumf>, %149, %cst_85 [0] : vector<1x8x128xf32> to vector<8x128xf32>
      %156 = arith.maximumf %154, %155 : vector<8x128xf32>
      %cst_86 = arith.constant 0xFF800000 : f32
      %157 = vector.broadcast %cst_86 : f32 to vector<8x128xf32>
      %158 = arith.cmpf ogt, %156, %157 : vector<8x128xf32>
      %cst_87 = arith.constant 0.000000e+00 : f32
      %159 = vector.broadcast %cst_87 : f32 to vector<8x128xf32>
      %160 = arith.select %158, %156, %159 : vector<8x128xi1>, vector<8x128xf32>
      %161 = arith.subf %154, %160 : vector<8x128xf32>
      %162 = math.exp %161 : vector<8x128xf32>
      %c0_88 = arith.constant 0 : index
      %c0_89 = arith.constant 0 : index
      %163 = vector.load %arg7[%c0_88, %c0_89] : memref<8x128xf32, #tpu.memory_space<vmem>>, vector<8x128xf32>
      %164 = arith.mulf %162, %163 : vector<8x128xf32>
      %165 = vector.shape_cast %160 : vector<8x128xf32> to vector<1x8x128xf32>
      %166 = arith.subf %149, %165 : vector<1x8x128xf32>
      %167 = math.exp %166 : vector<1x8x128xf32>
      %cst_90 = arith.constant dense<0.000000e+00> : vector<8x128xf32>
      %168 = vector.multi_reduction <add>, %167, %cst_90 [0] : vector<1x8x128xf32> to vector<8x128xf32>
      %169 = arith.addf %164, %168 : vector<8x128xf32>
      %c0_91 = arith.constant 0 : index
      %c0_92 = arith.constant 0 : index
      %170 = vector.load %arg7[%c0_91, %c0_92] : memref<8x128xf32, #tpu.memory_space<vmem>>, vector<8x128xf32>
      tpu.vector_store %arg7[%c0_91, %c0_92], %169 {strides = array<i32>} : memref<8x128xf32, #tpu.memory_space<vmem>>, vector<8x128xf32>,
      %c0_93 = arith.constant 0 : index
      %c0_94 = arith.constant 0 : index
      %171 = vector.load %arg6[%c0_93, %c0_94] : memref<8x128xf32, #tpu.memory_space<vmem>>, vector<8x128xf32>
      tpu.vector_store %arg6[%c0_93, %c0_94], %156 {strides = array<i32>} : memref<8x128xf32, #tpu.memory_space<vmem>>, vector<8x128xf32>,
      %c4_i32 = arith.constant 4 : i32
    } else {
    }
    %c0_i32_6 = arith.constant 0 : i32
    %13 = arith.cmpi eq, %arg1, %c0_i32_6 : i32
    %14 = arith.extui %13 : i1 to i32
    %c0_i32_7 = arith.constant 0 : i32
    %15 = arith.cmpi ne, %14, %c0_i32_7 : i32
    scf.if %15 {
      %c0 = arith.constant 0 : index
      %c0_8 = arith.constant 0 : index
      %16 = vector.load %arg5[%c0, %c0_8] : memref<8x128xf32, #tpu.memory_space<vmem>>, vector<8x128xf32>
      %c0_9 = arith.constant 0 : index
      %c0_10 = arith.constant 0 : index
      %c0_11 = arith.constant 0 : index
      %c0_12 = arith.constant 0 : index
      %17 = vector.load %arg4[%c0_9, %c0_10, %c0_11, %c0_12] : memref<1x3x8x128xf32, #tpu.memory_space<vmem>>, vector<1x1x8x128xf32>
      %18 = vector.shape_cast %17 : vector<1x1x8x128xf32> to vector<8x128xf32>
      %19 = vector.shape_cast %16 : vector<8x128xf32> to vector<1x1x8x128xf32>
      tpu.vector_store %arg4[%c0_9, %c0_10, %c0_11, %c0_12], %19 {strides = array<i32>} : memref<1x3x8x128xf32, #tpu.memory_space<vmem>>, vector<1x1x8x128xf32>,
      %c0_13 = arith.constant 0 : index
      %c0_14 = arith.constant 0 : index
      %20 = vector.load %arg6[%c0_13, %c0_14] : memref<8x128xf32, #tpu.memory_space<vmem>>, vector<8x128xf32>
      %c0_15 = arith.constant 0 : index
      %c1 = arith.constant 1 : index
      %c0_16 = arith.constant 0 : index
      %c0_17 = arith.constant 0 : index
      %21 = vector.load %arg4[%c0_15, %c1, %c0_16, %c0_17] : memref<1x3x8x128xf32, #tpu.memory_space<vmem>>, vector<1x1x8x128xf32>
      %22 = vector.shape_cast %21 : vector<1x1x8x128xf32> to vector<8x128xf32>
      %23 = vector.shape_cast %20 : vector<8x128xf32> to vector<1x1x8x128xf32>
      tpu.vector_store %arg4[%c0_15, %c1, %c0_16, %c0_17], %23 {strides = array<i32>} : memref<1x3x8x128xf32, #tpu.memory_space<vmem>>, vector<1x1x8x128xf32>,
      %c0_18 = arith.constant 0 : index
      %c0_19 = arith.constant 0 : index
      %24 = vector.load %arg7[%c0_18, %c0_19] : memref<8x128xf32, #tpu.memory_space<vmem>>, vector<8x128xf32>
      %c0_20 = arith.constant 0 : index
      %c2 = arith.constant 2 : index
      %c0_21 = arith.constant 0 : index
      %c0_22 = arith.constant 0 : index
      %25 = vector.load %arg4[%c0_20, %c2, %c0_21, %c0_22] : memref<1x3x8x128xf32, #tpu.memory_space<vmem>>, vector<1x1x8x128xf32>
      %26 = vector.shape_cast %25 : vector<1x1x8x128xf32> to vector<8x128xf32>
      %27 = vector.shape_cast %24 : vector<8x128xf32> to vector<1x1x8x128xf32>
      tpu.vector_store %arg4[%c0_20, %c2, %c0_21, %c0_22], %27 {strides = array<i32>} : memref<1x3x8x128xf32, #tpu.memory_space<vmem>>, vector<1x1x8x128xf32>,
    } else {
    }
    return
  }
  func.func @transform_0(%arg0: i32, %arg1: i32) -> (i32, i32) {
    %c1_i32 = arith.constant 1 : i32
    %0 = arith.muli %arg0, %c1_i32 : i32
    %1 = arith.addi %0, %arg1 : i32
    %c0_i32 = arith.constant 0 : i32
    %2 = arith.minsi %1, %c0_i32 : i32
    %c0_i32_0 = arith.constant 0 : i32
    %c0_i32_1 = arith.constant 0 : i32
    return %2, %c0_i32_0 : i32, i32
  }
  func.func @transform_1(%arg0: i32, %arg1: i32) -> (i32, i32) {
    %c1_i32 = arith.constant 1 : i32
    %0 = arith.muli %arg0, %c1_i32 : i32
    %1 = arith.addi %0, %arg1 : i32
    %c0_i32 = arith.constant 0 : i32
    %2 = arith.minsi %1, %c0_i32 : i32
    %c0_i32_0 = arith.constant 0 : i32
    %c0_i32_1 = arith.constant 0 : i32
    return %2, %c0_i32_0 : i32, i32
  }
  func.func @transform_2(%arg0: i32, %arg1: i32) -> (i32, i32, i32, i32) {
    %c0_i32 = arith.constant 0 : i32
    %c0_i32_0 = arith.constant 0 : i32
    %c0_i32_1 = arith.constant 0 : i32
    %c0_i32_2 = arith.constant 0 : i32
    return %arg0, %c0_i32, %c0_i32_0, %c0_i32_1 : i32, i32, i32, i32
  }
}

</mosaic_0001>

<llo_original>
// kernel: dvr_loss_pallas.1
$region0: #{dvr_loss_pallas.1}
  #allocation0 [shape = 'u32[]', space=smem, size = 0x4, offset = 0x4, fixed_abs, tag = 'smem constant byte address 0x4 - core index']
  #allocation1 [shape = 'u32[72,128]{1,0:T(1,128)}', space=vmem, size = 0x9000, scoped, tag = 'internal scratch']
  #allocation2 [shape = 'f32[8,128]{1,0:T(8,128)}', space=vmem, size = 0x1000, scoped, tag = 'scratch operand']
  #allocation3 [shape = 'f32[8,128]{1,0:T(8,128)}', space=vmem, size = 0x1000, scoped, tag = 'scratch operand']
  #allocation4 [shape = 'f32[8,128]{1,0:T(8,128)}', space=vmem, size = 0x1000, scoped, tag = 'scratch operand']
  %s0 = inlined_call_operand.hbm [shape: f32[32,128], index: 0, kind: input, shape index: {}]
  %s1 = inlined_call_operand.hbm [shape: f32[32,128], index: 1, kind: input, shape index: {}]
  %s2 = inlined_call_operand.vmem [shape: f32[1,3,8,128], index: 2, kind: output, shape index: {}]
  %s3 = sld [smem:[#allocation0]]
  $region42: #{dvr_loss_pallas.1} parent=0
    _
  %s5 = ssub.s32 1, %s3
  %s6 = scalar_select 0, %s5, %s3
  $region1: #{dvr_loss_pallas.1} parent=0
    #allocation5 [shape = 'u8[16384]{0}', space=vmem, size = 0x4000, scoped, tag = 'input window, operand 0, single buffered']
    #allocation6 [shape = 's32[1]{0}', space=sflag, size = 0x4, scoped, tag = 'scoped memory for dvr_loss_pallas.1']
    #allocation7 [shape = 'u8[16384]{0}', space=vmem, size = 0x4000, scoped, tag = 'input window, operand 1, single buffered']
    #allocation8 [shape = 's32[1]{0}', space=sflag, size = 0x4, scoped, tag = 'scoped memory for dvr_loss_pallas.1']
    %7 = vsyncpa [#allocation6], 0
    %8 = vsyncpa [#allocation8], 0
    // Predicated region
    $region2: #{dvr_loss_pallas.1} parent=1 // pred_check
      _
    $region3: #{dvr_loss_pallas.1} parent=1 // pred_check_branch
      %10 = sbr.rel (0) target = $region5
    $region4: #{dvr_loss_pallas.1} parent=1 // pred_region
      %s11 = sadd.s32 0, 0
      %p12 = scmp.lt.s32.totalorder %s11, 0
      %s13 = scalar_select %p12, %s11, 0
      %s14 = smul.u32 4, %s13
      %16 = vsyncadd [#allocation6], 0
      %s17 = smul.addr %s14, 8
      %s18 = scalar_lea.hbm %s0, %s17
      %s19 = sshll.u32 %s18, 4
      %s20 = int_to_ptr.hbm [resolvable:$true] %s19
      %s21 = sshll.u32 [#allocation5], 4
      %s22 = int_to_ptr.vmem [resolvable:$true] %s21
      %27 = dma.hbm_to_vmem [thread:$0]  %s20, 512, %s22, [#allocation6], 128, 128, 8
    $region5: #{dvr_loss_pallas.1} parent=1 // pred_fallthru
      _
    // Predicated region
    $region6: #{dvr_loss_pallas.1} parent=1 // pred_check
      _
    $region7: #{dvr_loss_pallas.1} parent=1 // pred_check_branch
      %29 = sbr.rel (0) target = $region9
    $region8: #{dvr_loss_pallas.1} parent=1 // pred_region
      %s30 = sadd.s32 0, 0
      %p31 = scmp.lt.s32.totalorder %s30, 0
      %s32 = scalar_select %p31, %s30, 0
      %s33 = smul.u32 4, %s32
      %35 = vsyncadd [#allocation8], 0
      %s36 = smul.addr %s33, 8
      %s37 = scalar_lea.hbm %s1, %s36
      %s38 = sshll.u32 %s37, 4
      %s39 = int_to_ptr.hbm [resolvable:$true] %s38
      %s40 = sshll.u32 [#allocation7], 4
      %s41 = int_to_ptr.vmem [resolvable:$true] %s40
      %46 = dma.hbm_to_vmem [thread:$0]  %s39, 512, %s41, [#allocation8], 128, 128, 8
    $region9: #{dvr_loss_pallas.1} parent=1 // pred_fallthru
      _
    // Predicated region
    $region10: #{dvr_loss_pallas.1} parent=1 // pred_check
      _
    $region11: #{dvr_loss_pallas.1} parent=1 // pred_check_branch
      %48 = sbr.rel (0) target = $region13
    $region12: #{dvr_loss_pallas.1} parent=1 // pred_region
      %50 = dma.done [#allocation6], 512
    $region13: #{dvr_loss_pallas.1} parent=1 // pred_fallthru
      _
    // Predicated region
    $region14: #{dvr_loss_pallas.1} parent=1 // pred_check
      _
    $region15: #{dvr_loss_pallas.1} parent=1 // pred_check_branch
      %52 = sbr.rel (0) target = $region17
    $region16: #{dvr_loss_pallas.1} parent=1 // pred_region
      %54 = dma.done [#allocation8], 512
    $region17: #{dvr_loss_pallas.1} parent=1 // pred_fallthru
      _
    %s55 = sadd.s32 0, 0
    %p56 = scmp.lt.s32.totalorder %s55, 0
    %s57 = scalar_select %p56, %s55, 0
    %s58 = smul.u32 4, %s57
    %s59 = sadd.s32 0, 0
    %p60 = scmp.lt.s32.totalorder %s59, 0
    %s61 = scalar_select %p60, %s59, 0
    %s62 = smul.u32 4, %s61
    %p63 = scmp.eq.s32.totalorder 0, 0
    // Predicated region
    $region18: #{dvr_loss_pallas.1} parent=1 // pred_check
      %p64 = pneg %p63
    $region19: #{dvr_loss_pallas.1} parent=1 // pred_check_branch
      %66 = sbr.rel (%p64) target = $region21
    $region20: #{dvr_loss_pallas.1} parent=1 // pred_region
      %67 = vst [vmem:[#allocation2] sm:$0xff] 0.0
      %68 = vst [vmem:[#allocation3] sm:$0xff] -inf
      %69 = vst [vmem:[#allocation4] sm:$0xff] 0.0
    $region21: #{dvr_loss_pallas.1} parent=1 // pred_fallthru
      _
    %s70 = sadd.s32 0, 0
    %s71 = smul.u32 %s70, 32
    %s72 = ssub.s32 32, %s71
    %p73 = scmp.ge.s32.totalorder %s72, 32
    // Predicated region
    $region22: #{dvr_loss_pallas.1} parent=1 // pred_check
      %p74 = pneg %p73
    $region23: #{dvr_loss_pallas.1} parent=1 // pred_check_branch
      %76 = sbr.rel (%p74) target = $region25
    $region24: #{dvr_loss_pallas.1} parent=1 // pred_region
      %v77 = vld [vmem:[#allocation5] sm:$0xff]
      %v78 = vld [vmem:[#allocation7] sm:$0xff]
      %v79 = vld [vmem:[#allocation2] sm:$0xff]
      %v80 = vadd.f32 %v77, 0.0
      %v81 = vadd.f32 %v79, %v80
      %82 = vst [vmem:[#allocation2] sm:$0xff] %v81
      %v83 = vld [vmem:[#allocation3] sm:$0xff]
      %v84 = vmax.f32 %v83, %v78
      %vm85 = vcmp.gt.f32.partialorder %v84, -inf
      %v86 = vsel %vm85, %v84, 0.0
      %v87 = vsub.f32 %v83, %v86
      %v88 = vmul.f32 %v87, 1.442695
      %v89 = vpow.pop %v88
      %v90 = vld [vmem:[#allocation4] sm:$0xff]
      %v91 = vmul.f32 %v89, %v90
      %v92 = vsub.f32 %v78, %v86
      %v93 = vmul.f32 %v92, 1.442695
      %v94 = vpow.pop %v93
      %v95 = vadd.f32 %v94, 0.0
      %v96 = vadd.f32 %v91, %v95
      %97 = vst [vmem:[#allocation4] sm:$0xff] %v96
      %98 = vst [vmem:[#allocation3] sm:$0xff] %v84
      %s99 = scalar_lea.vmem [#allocation5], 8
      %v100 = vld [vmem:[%s99] sm:$0xff]
      %s101 = scalar_lea.vmem [#allocation7], 8
      %v102 = vld [vmem:[%s101] sm:$0xff]
      %v103 = vld [vmem:[#allocation2] sm:$0xff]
      %v104 = vadd.f32 %v100, 0.0
      %v105 = vadd.f32 %v103, %v104
      %106 = vst [vmem:[#allocation2] sm:$0xff] %v105
      %v107 = vld [vmem:[#allocation3] sm:$0xff]
      %v108 = vmax.f32 %v107, %v102
      %vm109 = vcmp.gt.f32.partialorder %v108, -inf
      %v110 = vsel %vm109, %v108, 0.0
      %v111 = vsub.f32 %v107, %v110
      %v112 = vmul.f32 %v111, 1.442695
      %v113 = vpow.pop %v112
      %v114 = vld [vmem:[#allocation4] sm:$0xff]
      %v115 = vmul.f32 %v113, %v114
      %v116 = vsub.f32 %v102, %v110
      %v117 = vmul.f32 %v116, 1.442695
      %v118 = vpow.pop %v117
      %v119 = vadd.f32 %v118, 0.0
      %v120 = vadd.f32 %v115, %v119
      %121 = vst [vmem:[#allocation4] sm:$0xff] %v120
      %122 = vst [vmem:[#allocation3] sm:$0xff] %v108
      %s123 = scalar_lea.vmem [#allocation5], 16
      %v124 = vld [vmem:[%s123] sm:$0xff]
      %s125 = scalar_lea.vmem [#allocation7], 16
      %v126 = vld [vmem:[%s125] sm:$0xff]
      %v127 = vld [vmem:[#allocation2] sm:$0xff]
      %v128 = vadd.f32 %v124, 0.0
      %v129 = vadd.f32 %v127, %v128
      %130 = vst [vmem:[#allocation2] sm:$0xff] %v129
      %v131 = vld [vmem:[#allocation3] sm:$0xff]
      %v132 = vmax.f32 %v131, %v126
      %vm133 = vcmp.gt.f32.partialorder %v132, -inf
      %v134 = vsel %vm133, %v132, 0.0
      %v135 = vsub.f32 %v131, %v134
      %v136 = vmul.f32 %v135, 1.442695
      %v137 = vpow.pop %v136
      %v138 = vld [vmem:[#allocation4] sm:$0xff]
      %v139 = vmul.f32 %v137, %v138
      %v140 = vsub.f32 %v126, %v134
      %v141 = vmul.f32 %v140, 1.442695
      %v142 = vpow.pop %v141
      %v143 = vadd.f32 %v142, 0.0
      %v144 = vadd.f32 %v139, %v143
      %145 = vst [vmem:[#allocation4] sm:$0xff] %v144
      %146 = vst [vmem:[#allocation3] sm:$0xff] %v132
      %s147 = scalar_lea.vmem [#allocation5], 24
      %v148 = vld [vmem:[%s147] sm:$0xff]
      %s149 = scalar_lea.vmem [#allocation7], 24
      %v150 = vld [vmem:[%s149] sm:$0xff]
      %v151 = vld [vmem:[#allocation2] sm:$0xff]
      %v152 = vadd.f32 %v148, 0.0
      %v153 = vadd.f32 %v151, %v152
      %154 = vst [vmem:[#allocation2] sm:$0xff] %v153
      %v155 = vld [vmem:[#allocation3] sm:$0xff]
      %v156 = vmax.f32 %v155, %v150
      %vm157 = vcmp.gt.f32.partialorder %v156, -inf
      %v158 = vsel %vm157, %v156, 0.0
      %v159 = vsub.f32 %v155, %v158
      %v160 = vmul.f32 %v159, 1.442695
      %v161 = vpow.pop %v160
      %v162 = vld [vmem:[#allocation4] sm:$0xff]
      %v163 = vmul.f32 %v161, %v162
      %v164 = vsub.f32 %v150, %v158
      %v165 = vmul.f32 %v164, 1.442695
      %v166 = vpow.pop %v165
      %v167 = vadd.f32 %v166, 0.0
      %v168 = vadd.f32 %v163, %v167
      %169 = vst [vmem:[#allocation4] sm:$0xff] %v168
      %170 = vst [vmem:[#allocation3] sm:$0xff] %v156
    $region25: #{dvr_loss_pallas.1} parent=1 // pred_fallthru
      _
    %p171 = scmp.lt.s32.totalorder %s72, 32
    // Predicated region
    $region26: #{dvr_loss_pallas.1} parent=1 // pred_check
      %p172 = pneg %p171
    $region27: #{dvr_loss_pallas.1} parent=1 // pred_check_branch
      %174 = sbr.rel (%p172) target = $region29
    $region28: #{dvr_loss_pallas.1} parent=1 // pred_region
      %v175 = vld [vmem:[#allocation5] sm:$0xff]
      %v176 = vld [vmem:[#allocation7] sm:$0xff]
      %v177 = vlaneseq
      %v178 = vshrl.u32 %v177, 7
      %v179 = vstv 0
      %v180 = vadd.s32 %v179, %v178
      %v181 = vstv %s72
      %vm182 = vcmp.lt.s32.totalorder %v180, %v181
      %v183 = vsel %vm182, %v175, 0.0
      %v184 = vsel %vm182, %v176, -inf
      %v185 = vld [vmem:[#allocation2] sm:$0xff]
      %v186 = vadd.f32 %v183, 0.0
      %v187 = vadd.f32 %v185, %v186
      %188 = vst [vmem:[#allocation2] sm:$0xff] %v187
      %v189 = vld [vmem:[#allocation3] sm:$0xff]
      %v190 = vmax.f32 %v189, %v184
      %vm191 = vcmp.gt.f32.partialorder %v190, -inf
      %v192 = vsel %vm191, %v190, 0.0
      %v193 = vsub.f32 %v189, %v192
      %v194 = vmul.f32 %v193, 1.442695
      %v195 = vpow.pop %v194
      %v196 = vld [vmem:[#allocation4] sm:$0xff]
      %v197 = vmul.f32 %v195, %v196
      %v198 = vsub.f32 %v184, %v192
      %v199 = vmul.f32 %v198, 1.442695
      %v200 = vpow.pop %v199
      %v201 = vadd.f32 %v200, 0.0
      %v202 = vadd.f32 %v197, %v201
      %203 = vst [vmem:[#allocation4] sm:$0xff] %v202
      %204 = vst [vmem:[#allocation3] sm:$0xff] %v190
      %s205 = scalar_lea.vmem [#allocation5], 8
      %v206 = vld [vmem:[%s205] sm:$0xff]
      %s207 = scalar_lea.vmem [#allocation7], 8
      %v208 = vld [vmem:[%s207] sm:$0xff]
      %v209 = vstv 8
      %v210 = vadd.s32 %v209, %v178
      %vm211 = vcmp.lt.s32.totalorder %v210, %v181
      %v212 = vsel %vm211, %v206, 0.0
      %v213 = vsel %vm211, %v208, -inf
      %v214 = vld [vmem:[#allocation2] sm:$0xff]
      %v215 = vadd.f32 %v212, 0.0
      %v216 = vadd.f32 %v214, %v215
      %217 = vst [vmem:[#allocation2] sm:$0xff] %v216
      %v218 = vld [vmem:[#allocation3] sm:$0xff]
      %v219 = vmax.f32 %v218, %v213
      %vm220 = vcmp.gt.f32.partialorder %v219, -inf
      %v221 = vsel %vm220, %v219, 0.0
      %v222 = vsub.f32 %v218, %v221
      %v223 = vmul.f32 %v222, 1.442695
      %v224 = vpow.pop %v223
      %v225 = vld [vmem:[#allocation4] sm:$0xff]
      %v226 = vmul.f32 %v224, %v225
      %v227 = vsub.f32 %v213, %v221
      %v228 = vmul.f32 %v227, 1.442695
      %v229 = vpow.pop %v228
      %v230 = vadd.f32 %v229, 0.0
      %v231 = vadd.f32 %v226, %v230
      %232 = vst [vmem:[#allocation4] sm:$0xff] %v231
      %233 = vst [vmem:[#allocation3] sm:$0xff] %v219
      %s234 = scalar_lea.vmem [#allocation5], 16
      %v235 = vld [vmem:[%s234] sm:$0xff]
      %s236 = scalar_lea.vmem [#allocation7], 16
      %v237 = vld [vmem:[%s236] sm:$0xff]
      %v238 = vstv 16
      %v239 = vadd.s32 %v238, %v178
      %vm240 = vcmp.lt.s32.totalorder %v239, %v181
      %v241 = vsel %vm240, %v235, 0.0
      %v242 = vsel %vm240, %v237, -inf
      %v243 = vld [vmem:[#allocation2] sm:$0xff]
      %v244 = vadd.f32 %v241, 0.0
      %v245 = vadd.f32 %v243, %v244
      %246 = vst [vmem:[#allocation2] sm:$0xff] %v245
      %v247 = vld [vmem:[#allocation3] sm:$0xff]
      %v248 = vmax.f32 %v247, %v242
      %vm249 = vcmp.gt.f32.partialorder %v248, -inf
      %v250 = vsel %vm249, %v248, 0.0
      %v251 = vsub.f32 %v247, %v250
      %v252 = vmul.f32 %v251, 1.442695
      %v253 = vpow.pop %v252
      %v254 = vld [vmem:[#allocation4] sm:$0xff]
      %v255 = vmul.f32 %v253, %v254
      %v256 = vsub.f32 %v242, %v250
      %v257 = vmul.f32 %v256, 1.442695
      %v258 = vpow.pop %v257
      %v259 = vadd.f32 %v258, 0.0
      %v260 = vadd.f32 %v255, %v259
      %261 = vst [vmem:[#allocation4] sm:$0xff] %v260
      %262 = vst [vmem:[#allocation3] sm:$0xff] %v248
      %s263 = scalar_lea.vmem [#allocation5], 24
      %v264 = vld [vmem:[%s263] sm:$0xff]
      %s265 = scalar_lea.vmem [#allocation7], 24
      %v266 = vld [vmem:[%s265] sm:$0xff]
      %v267 = vstv 24
      %v268 = vadd.s32 %v267, %v178
      %vm269 = vcmp.lt.s32.totalorder %v268, %v181
      %v270 = vsel %vm269, %v264, 0.0
      %v271 = vsel %vm269, %v266, -inf
      %v272 = vld [vmem:[#allocation2] sm:$0xff]
      %v273 = vadd.f32 %v270, 0.0
      %v274 = vadd.f32 %v272, %v273
      %275 = vst [vmem:[#allocation2] sm:$0xff] %v274
      %v276 = vld [vmem:[#allocation3] sm:$0xff]
      %v277 = vmax.f32 %v276, %v271
      %vm278 = vcmp.gt.f32.partialorder %v277, -inf
      %v279 = vsel %vm278, %v277, 0.0
      %v280 = vsub.f32 %v276, %v279
      %v281 = vmul.f32 %v280, 1.442695
      %v282 = vpow.pop %v281
      %v283 = vld [vmem:[#allocation4] sm:$0xff]
      %v284 = vmul.f32 %v282, %v283
      %v285 = vsub.f32 %v271, %v279
      %v286 = vmul.f32 %v285, 1.442695
      %v287 = vpow.pop %v286
      %v288 = vadd.f32 %v287, 0.0
      %v289 = vadd.f32 %v284, %v288
      %290 = vst [vmem:[#allocation4] sm:$0xff] %v289
      %291 = vst [vmem:[#allocation3] sm:$0xff] %v277
    $region29: #{dvr_loss_pallas.1} parent=1 // pred_fallthru
      _
    // Predicated region
    $region30: #{dvr_loss_pallas.1} parent=1 // pred_check
      %p292 = pneg %p63
    $region31: #{dvr_loss_pallas.1} parent=1 // pred_check_branch
      %294 = sbr.rel (%p292) target = $region33
    $region32: #{dvr_loss_pallas.1} parent=1 // pred_region
      %v295 = vld [vmem:[#allocation2] sm:$0xff]
      %296 = vst [vmem:[%s2] sm:$0xff] %v295
      %v297 = vld [vmem:[#allocation3] sm:$0xff]
      %s298 = scalar_lea.vmem %s2, 8
      %299 = vst [vmem:[%s298] sm:$0xff] %v297
      %v300 = vld [vmem:[#allocation4] sm:$0xff]
      %s301 = scalar_lea.vmem %s2, 16
      %302 = vst [vmem:[%s301] sm:$0xff] %v300
    $region33: #{dvr_loss_pallas.1} parent=1 // pred_fallthru
      _
    // Predicated region
    $region34: #{dvr_loss_pallas.1} parent=1 // pred_check
      _
    $region35: #{dvr_loss_pallas.1} parent=1 // pred_check_branch
      %304 = sbr.rel (0) target = $region37
    $region36: #{dvr_loss_pallas.1} parent=1 // pred_region
      _
    $region37: #{dvr_loss_pallas.1} parent=1 // pred_fallthru
      _
    // Predicated region
    $region38: #{dvr_loss_pallas.1} parent=1 // pred_check
      _
    $region39: #{dvr_loss_pallas.1} parent=1 // pred_check_branch
      %306 = sbr.rel (0) target = $region41
    $region40: #{dvr_loss_pallas.1} parent=1 // pred_region
      _
    $region41: #{dvr_loss_pallas.1} parent=1 // pred_fallthru
      _
    %307 = vsyncpa [#allocation6], 1
    %308 = vsyncpa [#allocation8], 1

</llo_original>
